<compile_context>
chip_gen: v7x
topology: tpu7x:2x2x1
jax: 0.10.0
libtpu: 0.0.40
codegen_flags: <defaults>
</compile_context>

<pallas_src>
import functools

import jax
import jax.numpy as jnp
from jax import lax
from jax.experimental import pallas as pl
from jax.experimental.pallas import tpu as pltpu

PAD = "<PAD>"
ATOMIC = {'(S)': 0, '(S[dcl])': 1, '(S[wq])': 2, '(S[q])': 3, '(S[qem])': 4,
          '(S[em])': 5, '(S[bem])': 6, '(S[b])': 7, '(S[frg])': 8, '(S[for])': 9,
          '(S[intj])': 10, '(S[inv])': 11, '(S[to])': 12, '(S[pss])': 13,
          '(S[pt])': 14, '(S[ng])': 15, '(S[as])': 16, '(S[asup])': 17,
          '(S[poss])': 18, '(S[adj])': 19, '(NP)': 20, '(NP[nb])': 21,
          '(NP[expl])': 22, '(NP[thr])': 23, '(N)': 24, '(N[num])': 25,
          '(PP)': 26, '(,)': 27, '(.)': 28, '(conj)': 29, '(:)': 30, '(;)': 31,
          '(RRB)': 32, '(LRB)': 33, '(/)': 34, '(\\)': 35}

_CPARAMS = pltpu.CompilerParams(dimension_semantics=("parallel",))


# ----------------------------- Pallas kernels -----------------------------

def _pad_kernel(x_ref, o_ref):
    """Zero-pad the last (lane) dim. Each output lane is stored exactly once:
    valid prefix from x, zero tail."""
    c_in = x_ref.shape[-1]
    o_ref[:, :c_in] = x_ref[...].astype(o_ref.dtype)
    o_ref[:, c_in:] = jnp.zeros(
        (o_ref.shape[0], o_ref.shape[1] - c_in), o_ref.dtype)


def _pad_argmax_kernel(x_ref, o_ref, *, pad_idx):
    """Fused argmax over the zero-padded tensor, without materializing it.

    argmax(concat([x, zeros])) == argmax(x)      if max(x) >= 0
                               == pad_idx (=c_in) if max(x) <  0  (strict)
    (ties: jnp.argmax picks the first maximal index, so max(x)==0 correctly
     resolves to the first zero inside x, not the padding.)
    """
    x = x_ref[...].astype(jnp.float32)                      # (TM, C_in)
    a = jnp.argmax(x, axis=-1).astype(jnp.int32)
    if pad_idx is not None:
        m = jnp.max(x, axis=-1)
        a = jnp.where(m < 0.0, jnp.int32(pad_idx), a)
    o_ref[...] = a[:, None]


def _onehot_kernel(idx_ref, o_ref):
    idx = idx_ref[...].astype(jnp.int32)                    # (TM, 1)
    classes = lax.broadcasted_iota(jnp.int32, o_ref.shape, 1)  # (TM, C)
    o_ref[...] = (idx == classes).astype(o_ref.dtype)


def _idx_argmax_kernel(idx_ref, o_ref, *, num_classes):
    """argmax(one_hot(idx)) without materializing the one-hot: in-range ids map
    to themselves, out-of-range ids (all-zero one-hot row) map to 0."""
    idx = idx_ref[...].astype(jnp.int32)
    valid = (idx >= 0) & (idx < num_classes)
    o_ref[...] = jnp.where(valid, idx, jnp.int32(0))


# ------------------------------ wrappers ----------------------------------

def _row_tile(n_rows, row_bytes):
    """Sublane tile over the fused B*A row axis: multiple of 8, and sized so a
    double-buffered (in + out) block set stays well under the v7x scoped-VMEM
    budget (64 MiB phys / 32 MiB default). v5e/v6e (128 MiB) fit trivially."""
    if n_rows % 8 != 0:
        return n_rows                                  # full-array block (legal)
    budget = 4 << 20                                   # ~4 MiB of blocks
    tm = (budget // (2 * max(row_bytes, 1))) // 8 * 8
    return int(max(8, min(n_rows, tm, 4096)))


def pallas_pad_last_dim(x2d, out_dim):
    R, C = x2d.shape
    tm = _row_tile(R, (C + out_dim) * 4)
    return pl.pallas_call(
        _pad_kernel,
        out_shape=jax.ShapeDtypeStruct((R, out_dim), jnp.float32),
        grid=(pl.cdiv(R, tm),),
        in_specs=[pl.BlockSpec((tm, C), lambda i: (i, 0))],
        out_specs=pl.BlockSpec((tm, out_dim), lambda i: (i, 0)),
        compiler_params=_CPARAMS,
    )(x2d)


def pallas_pad_argmax(x2d, pad_idx):
    """Fused zero-pad-to-src_output_dim + argmax over the last dim."""
    R, C = x2d.shape
    tm = _row_tile(R, C * 4 + 4)
    out = pl.pallas_call(
        functools.partial(_pad_argmax_kernel, pad_idx=pad_idx),
        out_shape=jax.ShapeDtypeStruct((R, 1), jnp.int32),
        grid=(pl.cdiv(R, tm),),
        in_specs=[pl.BlockSpec((tm, C), lambda i: (i, 0))],
        out_specs=pl.BlockSpec((tm, 1), lambda i: (i, 0)),
        compiler_params=_CPARAMS,
    )(x2d)
    return out[:, 0]


def pallas_one_hot(idx2d, num_classes):
    R = idx2d.shape[0]
    tm = _row_tile(R, 4 + num_classes * 4)
    return pl.pallas_call(
        _onehot_kernel,
        out_shape=jax.ShapeDtypeStruct((R, num_classes), jnp.float32),
        grid=(pl.cdiv(R, tm),),
        in_specs=[pl.BlockSpec((tm, 1), lambda i: (i, 0))],
        out_specs=pl.BlockSpec((tm, num_classes), lambda i: (i, 0)),
        compiler_params=_CPARAMS,
    )(idx2d)


def pallas_onehot_argmax(idx2d, num_classes):
    R = idx2d.shape[0]
    tm = _row_tile(R, 8)
    out = pl.pallas_call(
        functools.partial(_idx_argmax_kernel, num_classes=num_classes),
        out_shape=jax.ShapeDtypeStruct((R, 1), jnp.int32),
        grid=(pl.cdiv(R, tm),),
        in_specs=[pl.BlockSpec((tm, 1), lambda i: (i, 0))],
        out_specs=pl.BlockSpec((tm, 1), lambda i: (i, 0)),
        compiler_params=_CPARAMS,
    )(idx2d)
    return out[:, 0]


class DummyAddressMapPallas:
    """JAX/Pallas port of DummyAddressMap (no learned parameters)."""

    def __init__(self, src_address_dim, tgt_address_dim, src_out_to_ix,
                 *args, tgt_out_to_ix=ATOMIC):
        self.src_address_dim = src_address_dim
        self.src_out_to_ix = dict(src_out_to_ix)
        if PAD not in self.src_out_to_ix:
            self.src_out_to_ix[PAD] = len(self.src_out_to_ix)
        self.src_output_dim = len(self.src_out_to_ix)
        self.address_dim = src_address_dim
        self.out_to_ix = self.src_out_to_ix
        self.output_dim = len(self.out_to_ix)
        self.ix_to_out = {v: k for k, v in self.out_to_ix.items()}

    def forward(self, x, indices=False, norm=False, argmax=False):
        # norm has no effect in DummyAddressMap (parent's self.norm is never hit).
        assert not (norm and argmax)
        B, A = x.shape[0], x.shape[1]

        if indices:
            idx2d = x.reshape(B * A, 1)                       # lane-dense rows
            if argmax:
                return pallas_onehot_argmax(idx2d, self.src_output_dim).reshape(B, A)
            return pallas_one_hot(idx2d, self.src_output_dim).reshape(
                B, A, self.src_output_dim)

        C = x.shape[2]
        x2d = x.reshape(B * A, C)                             # lane-dense rows
        if argmax:
            pad_idx = C if C < self.src_output_dim else None
            return pallas_pad_argmax(x2d, pad_idx).reshape(B, A)
        if C < self.src_output_dim:
            return pallas_pad_last_dim(x2d, self.src_output_dim).reshape(
                B, A, self.src_output_dim)
        return x

    __call__ = forward


# -------------------------------- main -------------------------------------

if __name__ == "__main__":
    key = jax.random.PRNGKey(0)
    B, A, C_in = 2, 8, 32                       # batch, n_addresses, n_outputs
    src_out_to_ix = dict(ATOMIC)                # 36 entries -> +PAD = 37

    mod = DummyAddressMapPallas(src_address_dim=A, tgt_address_dim=A,
                                src_out_to_ix=src_out_to_ix)

    k1, k2 = jax.random.split(key)
    x = jax.random.normal(k1, (B, A, C_in), dtype=jnp.float32)
    # force one all-negative row so the fused pad+argmax "padded zero wins" path
    # (result == C_in) is exercised
    x = x.at[0, 0, :].set(-jnp.abs(x[0, 0, :]) - 1.0)
    idx = jax.random.randint(k2, (B, A), 0, mod.src_output_dim, dtype=jnp.int32)

    # path 1: dense input, zero-pad last dim to src_output_dim
    y_pad = jax.block_until_ready(mod(x))
    # path 2: dense input + argmax over (virtually) padded last dim (fused)
    y_arg = jax.block_until_ready(mod(x, argmax=True))
    # path 3: index input -> one-hot
    y_oh = jax.block_until_ready(mod(idx, indices=True))
    # path 4: index input + argmax (fused; equals idx for in-range ids)
    y_oh_arg = jax.block_until_ready(mod(idx, indices=True, argmax=True))

    # reference checks (pure jnp)
    ref_pad = jnp.concatenate(
        [x, jnp.zeros((B, A, mod.src_output_dim - C_in), jnp.float32)], axis=2)
    ref_arg = jnp.argmax(ref_pad, axis=2).astype(jnp.int32)
    ref_oh = jax.nn.one_hot(idx, mod.src_output_dim, dtype=jnp.float32)

    assert y_pad.shape == (B, A, mod.src_output_dim)
    assert y_arg.shape == (B, A)
    assert y_oh.shape == (B, A, mod.src_output_dim)
    assert y_oh_arg.shape == (B, A)
    assert jnp.allclose(y_pad, ref_pad)
    assert jnp.array_equal(y_arg, ref_arg)
    assert jnp.allclose(y_oh, ref_oh)
    assert jnp.array_equal(y_oh_arg, idx)

    print("KERNEL_OK")
</pallas_src>

<mosaic_0001>
module attributes {stable_mosaic.version = 11 : i64} {
  func.func @_pad_kernel(%arg0: i32, %arg1: memref<16x32xf32, #tpu.memory_space<vmem>>, %arg2: memref<16x37xf32, #tpu.memory_space<vmem>>) attributes {dimension_semantics = [#tpu.dimension_semantics<parallel>], iteration_bounds = array<i64: 1>, scalar_prefetch = 0 : i64, scratch_operands = 0 : i64, tpu.core_type = #tpu.core_type<tc>, window_params = [{transform_indices = @transform_0, window_bounds = array<i64: 16, 32>}, {transform_indices = @transform_1, window_bounds = array<i64: 16, 37>}]} {
    %c0 = arith.constant 0 : index
    %c0_0 = arith.constant 0 : index
    %0 = vector.load %arg1[%c0, %c0_0] : memref<16x32xf32, #tpu.memory_space<vmem>>, vector<16x32xf32>
    %c0_1 = arith.constant 0 : index
    %c0_2 = arith.constant 0 : index
    %1 = vector.load %arg2[%c0_1, %c0_2] : memref<16x37xf32, #tpu.memory_space<vmem>>, vector<16x32xf32>
    tpu.vector_store %arg2[%c0_1, %c0_2], %0 {strides = array<i32>} : memref<16x37xf32, #tpu.memory_space<vmem>>, vector<16x32xf32>,
    %cst = arith.constant 0.000000e+00 : f32
    %2 = vector.broadcast %cst : f32 to vector<16x5xf32>
    %c0_3 = arith.constant 0 : index
    %c32 = arith.constant 32 : index
    %3 = vector.load %arg2[%c0_3, %c32] : memref<16x37xf32, #tpu.memory_space<vmem>>, vector<16x5xf32>
    tpu.vector_store %arg2[%c0_3, %c32], %2 {strides = array<i32>} : memref<16x37xf32, #tpu.memory_space<vmem>>, vector<16x5xf32>,
    return
  }
  func.func @transform_0(%arg0: i32) -> (i32, i32) {
    %c0_i32 = arith.constant 0 : i32
    %c0_i32_0 = arith.constant 0 : i32
    return %arg0, %c0_i32 : i32, i32
  }
  func.func @transform_1(%arg0: i32) -> (i32, i32) {
    %c0_i32 = arith.constant 0 : i32
    %c0_i32_0 = arith.constant 0 : i32
    return %arg0, %c0_i32 : i32, i32
  }
}

</mosaic_0001>

<llo_original>
// kernel: tpu_custom_call.1
$region0: #{tpu_custom_call.1}
  #allocation0 [shape = 'u32[]', space=smem, size = 0x4, offset = 0x4, fixed_abs, tag = 'smem constant byte address 0x4 - core index']
  #allocation1 [shape = 'u32[144,128]{1,0:T(1,128)}', space=vmem, size = 0x12000, scoped, tag = 'internal scratch']
  %s0 = inlined_call_operand.hbm [shape: f32[16,32], index: 0, kind: input, shape index: {}]
  %s1 = inlined_call_operand.hbm [shape: f32[16,37], index: 1, kind: output, shape index: {}]
  %s2 = sld [smem:[#allocation0]]
  $region18: #{tpu_custom_call.1} parent=0
    _
  %s4 = ssub.s32 1, %s2
  %s5 = scalar_select 0, %s4, %s2
  $region1: #{tpu_custom_call.1} parent=0
    #allocation2 [shape = 'u8[8192]{0}', space=vmem, size = 0x2000, scoped, tag = 'input window, operand 0, single buffered']
    #allocation3 [shape = 's32[1]{0}', space=sflag, size = 0x4, scoped, tag = 'scoped memory for tpu_custom_call.1']
    #allocation4 [shape = 's32[1]{0}', space=sflag, size = 0x4, scoped, tag = 'scoped memory for tpu_custom_call.1']
    #allocation5 [shape = 'u8[8192]{0}', space=vmem, size = 0x2000, scoped, tag = 'output window, operand 0, single buffered']
    %6 = vsyncpa [#allocation3], 0
    %7 = vsyncpa [#allocation4], 0
    // Predicated region
    $region2: #{tpu_custom_call.1} parent=1 // pred_check
      _
    $region3: #{tpu_custom_call.1} parent=1 // pred_check_branch
      %9 = sbr.rel (0) target = $region5
    $region4: #{tpu_custom_call.1} parent=1 // pred_region
      %s11 = ssub.s32 256, 256
      %12 = vsyncadd [#allocation3], %s11
      %s13 = sshll.u32 [#allocation2], 4
      %s14 = int_to_ptr.vmem [resolvable:$true] %s13
      %19 = dma.hbm_to_vmem [thread:$0]  %s0, 256, %s14, [#allocation3], 128, 128, 8
    $region5: #{tpu_custom_call.1} parent=1 // pred_fallthru
      _
    // Predicated region
    $region6: #{tpu_custom_call.1} parent=1 // pred_check
      _
    $region7: #{tpu_custom_call.1} parent=1 // pred_check_branch
      %21 = sbr.rel (0) target = $region9
    $region8: #{tpu_custom_call.1} parent=1 // pred_region
      %22 = dma.done [#allocation3], 256
    $region9: #{tpu_custom_call.1} parent=1 // pred_fallthru
      _
    %v23 = vld [vmem:[#allocation2] sm:$0xff]
    %v24 = vld [vmem:[#allocation2 + $0x8] sm:$0xff]
    %vm25 = vcmask 261120
    %26 = vst.msk [vmem:[#allocation5] sm:$0xff] %vm25, %v23
    %27 = vst.msk [vmem:[#allocation5 + $0x8] sm:$0xff] %vm25, %v24
    %vm28 = vcmask 302336
    %29 = vst.msk [vmem:[#allocation5] sm:$0xff] %vm28, 0.0
    %30 = vst.msk [vmem:[#allocation5 + $0x8] sm:$0xff] %vm28, 0.0
    // Predicated region
    $region10: #{tpu_custom_call.1} parent=1 // pred_check
      _
    $region11: #{tpu_custom_call.1} parent=1 // pred_check_branch
      %32 = sbr.rel (0) target = $region13
    $region12: #{tpu_custom_call.1} parent=1 // pred_region
      %s34 = ssub.s32 256, 256
      %35 = vsyncadd [#allocation4], %s34
      %s36 = sshll.u32 [#allocation5], 4
      %s37 = int_to_ptr.vmem [resolvable:$true] %s36
      %42 = dma.vmem_to_hbm [thread:$0]  %s37, 256, %s1, [#allocation4], 128, 128, 8
    $region13: #{tpu_custom_call.1} parent=1 // pred_fallthru
      _
    // Predicated region
    $region14: #{tpu_custom_call.1} parent=1 // pred_check
      _
    $region15: #{tpu_custom_call.1} parent=1 // pred_check_branch
      %44 = sbr.rel (0) target = $region17
    $region16: #{tpu_custom_call.1} parent=1 // pred_region
      %45 = dma.done [#allocation4], 256
    $region17: #{tpu_custom_call.1} parent=1 // pred_fallthru
      _
    %46 = vsyncpa [#allocation3], 1
    %47 = vsyncpa [#allocation4], 1

</llo_original>
